<compile_context>
chip_gen: v6e
topology: v6e:2x2x1
jax: 0.10.0
libtpu: 0.0.40
codegen_flags: <defaults>
</compile_context>

<pallas_src>
import functools

import jax
import jax.numpy as jnp
from jax.experimental import pallas as pl
from jax.experimental.pallas import tpu as pltpu


def _round_up(x, m):
    return (x + m - 1) // m * m


def _vmem_capacity_bytes():
    try:
        return int(pltpu.get_tpu_info().vmem_capacity_bytes)
    except Exception:
        return 64 << 20          # conservative fallback (v7x per-TensorCore VMEM)


def _node_axis_semantics():
    """v7x has 2 TensorCores per chip; only CORE_PARALLEL actually splits the
    node-block grid axis across them.  Other generations keep plain parallel."""
    try:
        kind = jax.devices()[0].device_kind.lower().replace(" ", "")
        if "v7" in kind or kind.startswith("tpu7"):
            return (pltpu.CORE_PARALLEL,)
    except Exception:
        pass
    return ("parallel",)


def _spec(shape, index_map, buffers=None):
    """BlockSpec with an optional pipeline-depth hint.

    buffers=1 -> constant-index resident operand, no wasted double buffer.
    buffers=3 -> deeper pipelining for the only per-step streamed operand (adj).
    Falls back to a plain BlockSpec if this jax build lacks pipeline_mode."""
    if buffers is not None:
        try:
            return pl.BlockSpec(shape, index_map, pipeline_mode=pl.Buffered(buffers))
        except Exception:
            pass
    return pl.BlockSpec(shape, index_map)


def _pick_attn_tile(n, hf_max, vmem_bytes):
    """Destination-node row tile TN for the attention kernel.

    Budget = 0.75*VMEM minus the resident operands (bf16 h + its f32 upcast +
    s_srcT); per-row cost covers the int8 adj tile (x3 buffers), ~6 f32
    [TN, Np] element-wise temporaries and the double-buffered small tiles."""
    n8 = _round_up(n, 8)
    hfl = max(_round_up(hf_max, 128), 128)
    resident = n8 * hfl * 2 + n8 * hfl * 4 + 8 * n8 * 4
    budget = int(vmem_bytes * 0.75) - resident - (8 << 20)
    per_row = 3 * n8 * 1 + 6 * n8 * 4 + 4 * 128 * 4 + 2 * hfl * 4
    if budget <= 32 * per_row:
        # TODO(synk): source-dimension tiling + online softmax fallback for graphs
        # whose resident h / adjacency row no longer fit in VMEM.
        tn = 32
    else:
        tn = budget // per_row
    if tn >= n8:
        return n8                 # single full block
    tn = max(32, tn - (tn % 32))  # int8-friendly sublane multiple
    return min(tn, 2048)


def _pick_proj_tile(n_pad, tn, cin, hf, vmem_bytes):
    """Projection kernel gets its own, much larger row tile (its per-row VMEM
    is only ~(cin + hf) words), picked as a multiple of tn dividing n_pad."""
    cinl = max(_round_up(cin, 128), 128)
    hfl = max(_round_up(hf, 128), 128)
    per_row = 2 * cinl * 4 + 2 * hfl * 2 + 2 * 128 * 4 + hfl * 4
    budget = int(vmem_bytes * 0.6) - cin * hfl * 4 - (4 << 20)
    tm_max = max(tn, budget // max(per_row, 1))
    nblocks = n_pad // tn
    for k in range(nblocks, 0, -1):
        if nblocks % k == 0 and k * tn <= tm_max:
            return k * tn
    return tn


# ---------------------------------------------------------------------------
# Kernel 1: feature projection + fused attention-score matmul
# ---------------------------------------------------------------------------
def _gat_project_kernel(x_ref, w_ref, amat_ref, h_ref, s_ref):
    h = jnp.dot(x_ref[...], w_ref[...], preferred_element_type=jnp.float32)
    h_ref[...] = h.astype(h_ref.dtype)                 # bf16 storage
    # s[:, hd]     = <h_head_hd, a_src_hd>
    # s[:, H + hd] = <h_head_hd, a_dst_hd>
    s_ref[...] = jnp.dot(h, amat_ref[...], preferred_element_type=jnp.float32)


def gat_project(x, W, amat, *, tm, vmem_bytes, semantics):
    n_pad, cin = x.shape
    hf = W.shape[1]
    two_h = amat.shape[1]

    cinl = max(_round_up(cin, 128), 128)
    hfl = max(_round_up(hf, 128), 128)
    need = (2 * tm * cinl * 4 + cin * hfl * 4 + hfl * 128 * 4
            + 2 * tm * hfl * 2 + 2 * tm * 128 * 4 + tm * hfl * 4 + (4 << 20))
    vmem_limit = int(min(max(int(need * 1.3), 32 << 20), int(vmem_bytes * 0.9)))

    return pl.pallas_call(
        _gat_project_kernel,
        out_shape=(jax.ShapeDtypeStruct((n_pad, hf), jnp.bfloat16),
                   jax.ShapeDtypeStruct((n_pad, two_h), jnp.float32)),
        grid=(n_pad // tm,),
        in_specs=[pl.BlockSpec((tm, cin), lambda i: (i, 0)),
                  _spec((cin, hf), lambda i: (0, 0), buffers=1),     # resident W
                  _spec((hf, two_h), lambda i: (0, 0), buffers=1)],  # resident A
        out_specs=(pl.BlockSpec((tm, hf), lambda i: (i, 0)),
                   pl.BlockSpec((tm, two_h), lambda i: (i, 0))),
        compiler_params=pltpu.CompilerParams(
            dimension_semantics=semantics,
            vmem_limit_bytes=vmem_limit),
    )(x, W, amat)


# ---------------------------------------------------------------------------
# Kernel 2: masked softmax attention + neighborhood aggregation
#           (grid over destination-node row blocks)
# ---------------------------------------------------------------------------
def _gat_attn_kernel(sdst_ref, ssrc_ref, h_ref, b_ref, adj_ref, out_ref,
                     *, heads, feat, apply_relu, pack_g, neg_slope=0.2):
    # int8 adjacency tile -> f32 mask, once per tile (multiplicative masking).
    mask = adj_ref[...].astype(jnp.float32)            # [TN, Np]
    # bf16 resident features upcast once ([Np, H*F] is tiny vs the [TN, Np] work).
    h = h_ref[...].astype(jnp.float32)                 # [Np, H*F]
    sdst = sdst_ref[...]                               # [TN, H]
    ssrc = ssrc_ref[...]                               # [H, Np]

    head_outs = []
    # TODO(synk): switch to lax.fori_loop + [TN, H*F] VMEM scratch if heads grows >4.
    for hd in range(heads):                            # heads is small & static
        # logits[i, j] = leaky_relu(<h_i, a_dst> + <h_j, a_src>)
        logits = sdst[:, hd:hd + 1] + ssrc[hd:hd + 1, :]                # [TN, Np]
        logits = jnp.where(logits >= 0, logits, neg_slope * logits)
        # softmax over incoming neighbors j: global max is a valid shift
        # (>= masked max), mask applied multiplicatively after exp.
        m = jnp.max(logits, axis=-1, keepdims=True)                     # [TN, 1]
        e = jnp.exp(logits - m) * mask                                  # [TN, Np]
        denom = jnp.maximum(jnp.sum(e, axis=-1, keepdims=True), 1e-30)  # [TN, 1]
        agg = jnp.dot(e, h[:, hd * feat:(hd + 1) * feat],
                      preferred_element_type=jnp.float32)               # [TN, F]
        head_outs.append(agg * pl.reciprocal(denom, approx=True))

    val = jnp.concatenate(head_outs, axis=-1) + b_ref[...]              # [TN, H*F]
    if apply_relu:
        val = jnp.maximum(val, 0.0)
    if pack_g > 1:
        # pack G destination rows per output row -> lane-dense unmasked store
        val = val.reshape(val.shape[0] // pack_g, pack_g * val.shape[1])
    out_ref[...] = val


def gat_attention(s_dst, s_srcT, h, b, adj_i8, *, heads, feat, apply_relu, tn,
                  vmem_bytes, semantics):
    n_pad = adj_i8.shape[0]
    hf = heads * feat

    # lane-dense output packing: G = 128 / (H*F) destination rows per stored row
    pack_g = 1
    if 0 < hf < 128 and 128 % hf == 0:
        g = 128 // hf
        if tn % g == 0 and ((tn // g) % 8 == 0 or tn == n_pad):
            pack_g = g
    out_rows = n_pad // pack_g
    out_cols = pack_g * hf

    hfl = max(_round_up(hf, 128), 128)
    need = (3 * tn * n_pad * 1          # int8 adj tile, 3-deep
            + 2 * tn * 128 * 4          # s_dst tiles
            + 8 * n_pad * 4             # resident s_srcT
            + n_pad * hfl * 2           # resident h (bf16, single buffered)
            + n_pad * hfl * 4           # in-kernel f32 upcast of h
            + 2 * (tn // pack_g) * max(out_cols, 128) * 4   # out tiles
            + 6 * tn * n_pad * 4        # element-wise temporaries
            + (4 << 20))                # slack
    vmem_limit = int(min(max(int(need * 1.3), 32 << 20), int(vmem_bytes * 0.9)))

    kernel = functools.partial(_gat_attn_kernel, heads=heads, feat=feat,
                               apply_relu=apply_relu, pack_g=pack_g)
    out = pl.pallas_call(
        kernel,
        out_shape=jax.ShapeDtypeStruct((out_rows, out_cols), jnp.float32),
        grid=(n_pad // tn,),
        in_specs=[pl.BlockSpec((tn, heads), lambda i: (i, 0)),            # s_dst rows
                  _spec((heads, n_pad), lambda i: (0, 0), buffers=1),     # s_src^T resident
                  _spec((n_pad, hf), lambda i: (0, 0), buffers=1),        # h resident (bf16)
                  _spec((1, hf), lambda i: (0, 0), buffers=1),            # bias resident
                  _spec((tn, n_pad), lambda i: (i, 0), buffers=3)],       # int8 adj row block
        out_specs=pl.BlockSpec((tn // pack_g, out_cols), lambda i: (i, 0)),
        compiler_params=pltpu.CompilerParams(
            dimension_semantics=semantics,
            vmem_limit_bytes=vmem_limit),
    )(s_dst, s_srcT, h, b, adj_i8)
    return out.reshape(n_pad, hf)     # cheap contiguous un-pack in the wrapper


# ---------------------------------------------------------------------------
# Layer / model wrappers
# ---------------------------------------------------------------------------
def _build_att_matrix(a_src, a_dst):
    """Pack per-head attention vectors into [H*F, 2H] so s = h @ A gives
    s[:, hd] = <h_head, a_src_hd> and s[:, H+hd] = <h_head, a_dst_hd>."""
    H, F = a_src.shape
    amat = jnp.zeros((H * F, 2 * H), jnp.float32)
    for hd in range(H):
        amat = amat.at[hd * F:(hd + 1) * F, hd].set(a_src[hd])
        amat = amat.at[hd * F:(hd + 1) * F, H + hd].set(a_dst[hd])
    return amat


def gat_conv(x, adj_i8, W, a_src, a_dst, b, *, heads, feat, apply_relu,
             tn, tm, vmem_bytes, semantics):
    amat = _build_att_matrix(a_src, a_dst)
    h, s = gat_project(x, W, amat, tm=tm, vmem_bytes=vmem_bytes, semantics=semantics)
    s_srcT = jnp.transpose(s[:, :heads])          # [H, Np] tiny XLA transpose
    s_dst = s[:, heads:]                          # [Np, H]
    return gat_attention(s_dst, s_srcT, h, b, adj_i8, heads=heads, feat=feat,
                         apply_relu=apply_relu, tn=tn, vmem_bytes=vmem_bytes,
                         semantics=semantics)


def gat_forward(x, adj, params):
    n = x.shape[0]
    vmem_bytes = _vmem_capacity_bytes()
    semantics = _node_axis_semantics()
    hf_max = max(H * Fp for (_, _, _, _, H, Fp) in params)
    tn = _pick_attn_tile(n, hf_max, vmem_bytes)
    n_pad = _round_up(n, tn)

    # pad nodes once: padded rows/cols have no edges and are sliced off at the end
    x_p = jnp.pad(x, ((0, n_pad - n), (0, 0)))
    adj_i8 = jnp.pad(adj, ((0, n_pad - n), (0, n_pad - n))).astype(jnp.int8)

    out = x_p
    n_layers = len(params)
    for i, (W, a_s, a_d, b, H, Fp) in enumerate(params):
        tm = _pick_proj_tile(n_pad, tn, W.shape[0], H * Fp, vmem_bytes)
        apply_relu = i != n_layers - 1            # F.relu fused into the kernel
        out = gat_conv(out, adj_i8, W, a_s, a_d, b, heads=H, feat=Fp,
                       apply_relu=apply_relu, tn=tn, tm=tm,
                       vmem_bytes=vmem_bytes, semantics=semantics)
        # TODO(synk): F.dropout(p=0.5, training=True) omitted — inference/eval semantics.
        # x.view(-1, heads*(hidden//heads)) between middle layers is an identity reshape.
    return out[:n]


if __name__ == "__main__":
    key = jax.random.PRNGKey(0)
    N = 16                 # num nodes
    in_channels = 8
    hidden = 32
    heads = 4
    num_layers = 3
    F_per = hidden // heads

    k_x, k_e, k_p = jax.random.split(key, 3)
    x = jax.random.normal(k_x, (N, in_channels), jnp.float32)

    # deterministic random edge_index [2, E]  (row=source, col=target, PyG convention)
    E = 40
    src = jax.random.randint(jax.random.fold_in(k_e, 0), (E,), 0, N)
    dst = jax.random.randint(jax.random.fold_in(k_e, 1), (E,), 0, N)
    edge_index = jnp.stack([src, dst])

    # dense int8 adjacency with self loops: adj[i, j] = 1 iff edge j -> i
    adj = jnp.zeros((N, N), jnp.int8)
    adj = adj.at[edge_index[1], edge_index[0]].set(1)
    adj = adj.at[jnp.arange(N), jnp.arange(N)].set(1)

    # deterministic glorot-uniform init (GATConv: lin weight, att_src, att_dst, bias)
    def glorot(k, shape):
        lim = (6.0 / (shape[0] + shape[-1])) ** 0.5
        return jax.random.uniform(k, shape, jnp.float32, -lim, lim)

    layer_dims = [(in_channels, heads, F_per),   # GATConv(in, hidden//heads, heads=4)
                  (hidden, heads, F_per),        # GATConv(hidden, hidden//heads, heads=4)
                  (hidden, 1, hidden)]           # GATConv(hidden, hidden, heads=1)
    params = []
    for li, (cin, H, Fp) in enumerate(layer_dims):
        kw, ks, kd = jax.random.split(jax.random.fold_in(k_p, li), 3)
        Wm = glorot(kw, (cin, H * Fp))
        a_s = glorot(ks, (H, Fp))
        a_d = glorot(kd, (H, Fp))
        bias = jnp.zeros((1, H * Fp), jnp.float32)
        params.append((Wm, a_s, a_d, bias, H, Fp))

    z = gat_forward(x, adj, params)
    jax.block_until_ready(z)
    assert z.shape == (N, hidden) and z.dtype == jnp.float32
    assert bool(jnp.all(jnp.isfinite(z)))
    print("KERNEL_OK")
</pallas_src>

<mosaic_0001>
module attributes {stable_mosaic.version = 11 : i64} {
  func.func @_gat_project_kernel(%arg0: i32, %arg1: memref<16x8xf32, #tpu.memory_space<vmem>>, %arg2: memref<8x32xf32, #tpu.memory_space<vmem>>, %arg3: memref<32x8xf32, #tpu.memory_space<vmem>>, %arg4: memref<16x32xbf16, #tpu.memory_space<vmem>>, %arg5: memref<16x8xf32, #tpu.memory_space<vmem>>) attributes {dimension_semantics = [#tpu.dimension_semantics<parallel>], iteration_bounds = array<i64: 1>, scalar_prefetch = 0 : i64, scratch_operands = 0 : i64, tpu.core_type = #tpu.core_type<tc>, window_params = [{transform_indices = @transform_0, window_bounds = array<i64: 16, 8>}, {pipeline_mode = #tpu.pipeline_mode<synchronous>, transform_indices = @transform_1, window_bounds = array<i64: 8, 32>}, {pipeline_mode = #tpu.pipeline_mode<synchronous>, transform_indices = @transform_2, window_bounds = array<i64: 32, 8>}, {transform_indices = @transform_3, window_bounds = array<i64: 16, 32>}, {transform_indices = @transform_4, window_bounds = array<i64: 16, 8>}]} {
    %c0 = arith.constant 0 : index
    %c0_0 = arith.constant 0 : index
    %0 = vector.load %arg1[%c0, %c0_0] : memref<16x8xf32, #tpu.memory_space<vmem>>, vector<16x8xf32>
    %c0_1 = arith.constant 0 : index
    %c0_2 = arith.constant 0 : index
    %1 = vector.load %arg2[%c0_1, %c0_2] : memref<8x32xf32, #tpu.memory_space<vmem>>, vector<8x32xf32>
    %cst = arith.constant dense<0.000000e+00> : vector<16x32xf32>
    %2 = tpu.matmul %0, %1, %cst {dimension_numbers = #tpu.dot_dimension_numbers<[1], [0], [0], [1], [0, 0, 1, 1], [], []>} : vector<16x8xf32>, vector<8x32xf32>, vector<16x32xf32> -> vector<16x32xf32>
    %3 = arith.truncf %2 : vector<16x32xf32> to vector<16x32xbf16>
    %c0_3 = arith.constant 0 : index
    %c0_4 = arith.constant 0 : index
    %4 = vector.load %arg4[%c0_3, %c0_4] : memref<16x32xbf16, #tpu.memory_space<vmem>>, vector<16x32xbf16>
    tpu.vector_store %arg4[%c0_3, %c0_4], %3 {strides = array<i32>} : memref<16x32xbf16, #tpu.memory_space<vmem>>, vector<16x32xbf16>,
    %c0_5 = arith.constant 0 : index
    %c0_6 = arith.constant 0 : index
    %5 = vector.load %arg3[%c0_5, %c0_6] : memref<32x8xf32, #tpu.memory_space<vmem>>, vector<32x8xf32>
    %cst_7 = arith.constant dense<0.000000e+00> : vector<16x8xf32>
    %6 = tpu.matmul %2, %5, %cst_7 {dimension_numbers = #tpu.dot_dimension_numbers<[1], [0], [0], [1], [0, 0, 1, 1], [], []>} : vector<16x32xf32>, vector<32x8xf32>, vector<16x8xf32> -> vector<16x8xf32>
    %c0_8 = arith.constant 0 : index
    %c0_9 = arith.constant 0 : index
    %7 = vector.load %arg5[%c0_8, %c0_9] : memref<16x8xf32, #tpu.memory_space<vmem>>, vector<16x8xf32>
    tpu.vector_store %arg5[%c0_8, %c0_9], %6 {strides = array<i32>} : memref<16x8xf32, #tpu.memory_space<vmem>>, vector<16x8xf32>,
    return
  }
  func.func @transform_0(%arg0: i32) -> (i32, i32) {
    %c0_i32 = arith.constant 0 : i32
    %c0_i32_0 = arith.constant 0 : i32
    return %arg0, %c0_i32 : i32, i32
  }
  func.func @transform_1(%arg0: i32) -> (i32, i32) {
    %c0_i32 = arith.constant 0 : i32
    %c0_i32_0 = arith.constant 0 : i32
    %c0_i32_1 = arith.constant 0 : i32
    return %c0_i32, %c0_i32_0 : i32, i32
  }
  func.func @transform_2(%arg0: i32) -> (i32, i32) {
    %c0_i32 = arith.constant 0 : i32
    %c0_i32_0 = arith.constant 0 : i32
    %c0_i32_1 = arith.constant 0 : i32
    return %c0_i32, %c0_i32_0 : i32, i32
  }
  func.func @transform_3(%arg0: i32) -> (i32, i32) {
    %c0_i32 = arith.constant 0 : i32
    %c0_i32_0 = arith.constant 0 : i32
    return %arg0, %c0_i32 : i32, i32
  }
  func.func @transform_4(%arg0: i32) -> (i32, i32) {
    %c0_i32 = arith.constant 0 : i32
    %c0_i32_0 = arith.constant 0 : i32
    return %arg0, %c0_i32 : i32, i32
  }
}

</mosaic_0001>

<llo_original>
// kernel: tpu_custom_call.1
$region0: #{tpu_custom_call.1}
  #allocation0 [shape = 'u32[]', space=smem, size = 0x4, offset = 0x4, fixed_abs, tag = 'smem constant byte address 0x4 - core index']
  #allocation1 [shape = 'u32[144,128]{1,0:T(1,128)}', space=vmem, size = 0x12000, scoped, tag = 'internal scratch']
  %s0 = inlined_call_operand.vmem [shape: f32[16,8], index: 0, kind: input, shape index: {}]
  %s1 = inlined_call_operand.vmem [shape: f32[8,32], index: 1, kind: input, shape index: {}]
  %s2 = inlined_call_operand.vmem [shape: f32[32,8], index: 2, kind: input, shape index: {}]
  %s3 = inlined_call_operand.hbm [shape: bf16[16,32], index: 3, kind: output, shape index: {0}]
  %s4 = inlined_call_operand.vmem [shape: f32[16,8], index: 4, kind: output, shape index: {1}]
  %5 = xla_tuple %s3, %s4
  %s6 = sld [smem:[#allocation0]]
  $region30: #{tpu_custom_call.1} parent=0
    _
  %s8 = ssub.s32 1, %s6
  %s9 = scalar_select 0, %s8, %s6
  $region1: #{tpu_custom_call.1} parent=0
    #allocation2 [shape = 'u8[4096]{0}', space=vmem, size = 0x1000, scoped, tag = 'output window, operand 0, single buffered']
    #allocation3 [shape = 's32[1]{0}', space=sflag, size = 0x4, scoped, tag = 'scoped memory for tpu_custom_call.1']
    %10 = vsyncpa [#allocation3], 0
    // Predicated region
    $region2: #{tpu_custom_call.1} parent=1 // pred_check
      _
    $region3: #{tpu_custom_call.1} parent=1 // pred_check_branch
      %12 = sbr.rel (0) target = $region5
    $region4: #{tpu_custom_call.1} parent=1 // pred_region
      _
    $region5: #{tpu_custom_call.1} parent=1 // pred_fallthru
      _
    // Predicated region
    $region6: #{tpu_custom_call.1} parent=1 // pred_check
      _
    $region7: #{tpu_custom_call.1} parent=1 // pred_check_branch
      %14 = sbr.rel (0) target = $region9
    $region8: #{tpu_custom_call.1} parent=1 // pred_region
      _
    $region9: #{tpu_custom_call.1} parent=1 // pred_fallthru
      _
    // Predicated region
    $region10: #{tpu_custom_call.1} parent=1 // pred_check
      _
    $region11: #{tpu_custom_call.1} parent=1 // pred_check_branch
      %16 = sbr.rel (0) target = $region13
    $region12: #{tpu_custom_call.1} parent=1 // pred_region
      _
    $region13: #{tpu_custom_call.1} parent=1 // pred_fallthru
      _
    %v17 = vld [vmem:[%s0] sm:$0xff]
    %v18 = vld [vmem:[%s0 + $0x8] sm:$0xff]
    %v19 = vld [vmem:[%s1] sm:$0xff]
    %vm20 = vcmask 64512
    %v22 = vsel %vm20, %v17, 0
    %v25 = vsel %vm20, %v18, 0
    %27 = vmatprep.subr.mxu0 0.0
    %28 = vmatpush1.msra.mxu0 0.0
    %29 = vmatprep.subr.mxu0 0.0
    %30 = vmatpush1.msra.mxu0 0.0
    %31 = vmatprep.subr.mxu0 0.0
    %32 = vmatpush1.msra.mxu0 0.0
    %33 = vmatprep.subr.mxu0 0.0
    %34 = vmatpush1.msra.mxu0 0.0
    %35 = vmatprep.subr.mxu0 0.0
    %36 = vmatpush1.msra.mxu0 0.0
    %37 = vmatprep.subr.mxu0 0.0
    %38 = vmatpush1.msra.mxu0 0.0
    %39 = vmatprep.subr.mxu0 0.0
    %40 = vmatpush1.msra.mxu0 0.0
    %41 = vmatprep.subr.mxu0 0.0
    %42 = vmatpush1.msra.mxu0 0.0
    %43 = vmatprep.subr.mxu0 0.0
    %44 = vmatpush1.msra.mxu0 0.0
    %45 = vmatprep.subr.mxu0 0.0
    %46 = vmatpush1.msra.mxu0 0.0
    %47 = vmatprep.subr.mxu0 0.0
    %48 = vmatpush1.msra.mxu0 0.0
    %49 = vmatprep.subr.mxu0 0.0
    %50 = vmatpush1.msra.mxu0 0.0
    %51 = vmatprep.subr.mxu0 0.0
    %52 = vmatpush1.msra.mxu0 0.0
    %53 = vmatprep.subr.mxu0 0.0
    %54 = vmatpush1.msra.mxu0 0.0
    %55 = vmatprep.subr.mxu0 0.0
    %56 = vmatpush1.msra.mxu0 0.0
    %57 = vmatprep.subr.mxu0 0.0
    %58 = vmatpush1.msra.mxu0 %v19
    %59 = vmatprep.subr.mxu0 0.0
    %60 = vmatpush2.msra.mxu0 0.0
    %61 = vmatprep.subr.mxu0 0.0
    %62 = vmatpush2.msra.mxu0 0.0
    %63 = vmatprep.subr.mxu0 0.0
    %64 = vmatpush2.msra.mxu0 0.0
    %65 = vmatprep.subr.mxu0 0.0
    %66 = vmatpush2.msra.mxu0 0.0
    %67 = vmatprep.subr.mxu0 0.0
    %68 = vmatpush2.msra.mxu0 0.0
    %69 = vmatprep.subr.mxu0 0.0
    %70 = vmatpush2.msra.mxu0 0.0
    %71 = vmatprep.subr.mxu0 0.0
    %72 = vmatpush2.msra.mxu0 0.0
    %73 = vmatprep.subr.mxu0 0.0
    %74 = vmatpush2.msra.mxu0 0.0
    %75 = vmatprep.subr.mxu0 0.0
    %76 = vmatpush2.msra.mxu0 0.0
    %77 = vmatprep.subr.mxu0 0.0
    %78 = vmatpush2.msra.mxu0 0.0
    %79 = vmatprep.subr.mxu0 0.0
    %80 = vmatpush2.msra.mxu0 0.0
    %81 = vmatprep.subr.mxu0 0.0
    %82 = vmatpush2.msra.mxu0 0.0
    %83 = vmatprep.subr.mxu0 0.0
    %84 = vmatpush2.msra.mxu0 0.0
    %85 = vmatprep.subr.mxu0 0.0
    %86 = vmatpush2.msra.mxu0 0.0
    %87 = vmatprep.subr.mxu0 0.0
    %88 = vmatpush2.msra.mxu0 0.0
    %89 = vmatprep.subr.mxu0 0.0
    %90 = vmatpush2.msra.mxu0 0.0
    %91 = vmatprep.mubr.f32.mxu0 0.0
    %92 = vmatmul.mubr.f32.gmra.mxu0 %v22
    %v93 = vpop.f32.mrf.mxu0
    %v94 = vadd.f32 0.0, %v93
    %v95 = vpop.f32.mrf.mxu0
    %96 = vmatprep.mubr.f32.mxu0 0.0
    %97 = vmatmul.mubr.f32.gmra.mxu0 %v25
    %v98 = vpop.f32.mrf.mxu0
    %v99 = vadd.f32 0.0, %v98
    %v100 = vpop.f32.mrf.mxu0
    %101 = vdwg.mxu0
    %v102 = vpack.c.bf16 %v99, %v94
    %v104 = vunpack.c.l.b16 %v102
    %v105 = vunpack.c.h.b16 %v102
    %v106 = vpack.c.b16 %v104, %v104
    %v107 = vpack.c.b16 %v105, %v105
    %vm110 = vcmask 257024
    %111 = vst.msk [vmem:[#allocation2] sm:$0xf] %vm110, %v106
    %112 = vst.msk [vmem:[#allocation2 + $0x4] sm:$0xf] %vm110, %v107
    %v113 = vld [vmem:[%s2] sm:$0xff]
    %v114 = vld [vmem:[%s2 + $0x8] sm:$0xff]
    %v115 = vld [vmem:[%s2 + $0x10] sm:$0xff]
    %v116 = vld [vmem:[%s2 + $0x18] sm:$0xff]
    %vm117 = vcmask 261120
    %v119 = vsel %vm117, %v94, 0
    %v122 = vsel %vm117, %v99, 0
    %124 = vmatprep.subr.mxu0 0.0
    %125 = vmatpush1.msra.mxu0 0.0
    %126 = vmatprep.subr.mxu0 0.0
    %127 = vmatpush1.msra.mxu0 0.0
    %128 = vmatprep.subr.mxu0 0.0
    %129 = vmatpush1.msra.mxu0 0.0
    %130 = vmatprep.subr.mxu0 0.0
    %131 = vmatpush1.msra.mxu0 0.0
    %132 = vmatprep.subr.mxu0 0.0
    %133 = vmatpush1.msra.mxu0 0.0
    %134 = vmatprep.subr.mxu0 0.0
    %135 = vmatpush1.msra.mxu0 0.0
    %136 = vmatprep.subr.mxu0 0.0
    %137 = vmatpush1.msra.mxu0 0.0
    %138 = vmatprep.subr.mxu0 0.0
    %139 = vmatpush1.msra.mxu0 0.0
    %140 = vmatprep.subr.mxu0 0.0
    %141 = vmatpush1.msra.mxu0 0.0
    %142 = vmatprep.subr.mxu0 0.0
    %143 = vmatpush1.msra.mxu0 0.0
    %144 = vmatprep.subr.mxu0 0.0
    %145 = vmatpush1.msra.mxu0 0.0
    %146 = vmatprep.subr.mxu0 0.0
    %147 = vmatpush1.msra.mxu0 0.0
    %148 = vmatprep.subr.mxu0 0.0
    %149 = vmatpush1.msra.mxu0 %v116
    %150 = vmatprep.subr.mxu0 0.0
    %151 = vmatpush1.msra.mxu0 %v115
    %152 = vmatprep.subr.mxu0 0.0
    %153 = vmatpush1.msra.mxu0 %v114
    %154 = vmatprep.subr.mxu0 0.0
    %155 = vmatpush1.msra.mxu0 %v113
    %156 = vmatprep.subr.mxu0 0.0
    %157 = vmatpush2.msra.mxu0 0.0
    %158 = vmatprep.subr.mxu0 0.0
    %159 = vmatpush2.msra.mxu0 0.0
    %160 = vmatprep.subr.mxu0 0.0
    %161 = vmatpush2.msra.mxu0 0.0
    %162 = vmatprep.subr.mxu0 0.0
    %163 = vmatpush2.msra.mxu0 0.0
    %164 = vmatprep.subr.mxu0 0.0
    %165 = vmatpush2.msra.mxu0 0.0
    %166 = vmatprep.subr.mxu0 0.0
    %167 = vmatpush2.msra.mxu0 0.0
    %168 = vmatprep.subr.mxu0 0.0
    %169 = vmatpush2.msra.mxu0 0.0
    %170 = vmatprep.subr.mxu0 0.0
    %171 = vmatpush2.msra.mxu0 0.0
    %172 = vmatprep.subr.mxu0 0.0
    %173 = vmatpush2.msra.mxu0 0.0
    %174 = vmatprep.subr.mxu0 0.0
    %175 = vmatpush2.msra.mxu0 0.0
    %176 = vmatprep.subr.mxu0 0.0
    %177 = vmatpush2.msra.mxu0 0.0
    %178 = vmatprep.subr.mxu0 0.0
    %179 = vmatpush2.msra.mxu0 0.0
    %180 = vmatprep.subr.mxu0 0.0
    %181 = vmatpush2.msra.mxu0 0.0
    %182 = vmatprep.subr.mxu0 0.0
    %183 = vmatpush2.msra.mxu0 0.0
    %184 = vmatprep.subr.mxu0 0.0
    %185 = vmatpush2.msra.mxu0 0.0
    %186 = vmatprep.subr.mxu0 0.0
    %187 = vmatpush2.msra.mxu0 0.0
    %188 = vmatprep.mubr.f32.mxu0 0.0
    %189 = vmatmul.mubr.f32.gmra.mxu0 %v119
    %v190 = vpop.f32.mrf.mxu0
    %v191 = vadd.f32 0.0, %v190
    %v192 = vpop.f32.mrf.mxu0
    %193 = vmatprep.mubr.f32.mxu0 0.0
    %194 = vmatmul.mubr.f32.gmra.mxu0 %v122
    %v195 = vpop.f32.mrf.mxu0
    %v196 = vadd.f32 0.0, %v195
    %v197 = vpop.f32.mrf.mxu0
    %198 = vdwg.mxu0
    %199 = vst.msk [vmem:[%s4] sm:$0xff] %vm20, %v191
    %200 = vst.msk [vmem:[%s4 + $0x8] sm:$0xff] %vm20, %v196
    // Predicated region
    $region14: #{tpu_custom_call.1} parent=1 // pred_check
      _
    $region15: #{tpu_custom_call.1} parent=1 // pred_check_branch
      %202 = sbr.rel (0) target = $region17
    $region16: #{tpu_custom_call.1} parent=1 // pred_region
      %s204 = ssub.s32 128, 128
      %205 = vsyncadd [#allocation3], %s204
      %s206 = sshll.u32 [#allocation2], 4
      %s207 = int_to_ptr.vmem [resolvable:$true] %s206
      %212 = dma.vmem_to_hbm [thread:$0]  %s207, 128, %s3, [#allocation3], 64, 64, 4
    $region17: #{tpu_custom_call.1} parent=1 // pred_fallthru
      _
    // Predicated region
    $region18: #{tpu_custom_call.1} parent=1 // pred_check
      _
    $region19: #{tpu_custom_call.1} parent=1 // pred_check_branch
      %214 = sbr.rel (0) target = $region21
    $region20: #{tpu_custom_call.1} parent=1 // pred_region
      _
    $region21: #{tpu_custom_call.1} parent=1 // pred_fallthru
      _
    // Predicated region
    $region22: #{tpu_custom_call.1} parent=1 // pred_check
      _
    $region23: #{tpu_custom_call.1} parent=1 // pred_check_branch
      %216 = sbr.rel (0) target = $region25
    $region24: #{tpu_custom_call.1} parent=1 // pred_region
      %217 = dma.done [#allocation3], 128
    $region25: #{tpu_custom_call.1} parent=1 // pred_fallthru
      _
    // Predicated region
    $region26: #{tpu_custom_call.1} parent=1 // pred_check
      _
    $region27: #{tpu_custom_call.1} parent=1 // pred_check_branch
      %219 = sbr.rel (0) target = $region29
    $region28: #{tpu_custom_call.1} parent=1 // pred_region
      _
    $region29: #{tpu_custom_call.1} parent=1 // pred_fallthru
      _
    %220 = vsyncpa [#allocation3], 1

</llo_original>
